<compile_context>
chip_gen: v7x
topology: tpu7x:2x2x1
jax: 0.10.0
libtpu: 0.0.40
codegen_flags: <defaults>
</compile_context>

<pallas_src>
import functools

import jax
import jax.numpy as jnp
from jax.experimental import pallas as pl
from jax.experimental.pallas import tpu as pltpu

_LANES = 128
_SUBLANES = 8
_PAGE = _LANES * _SUBLANES  # 1024 samples per fully (8,128)-tiled row page


def _round_up(x, m):
    return ((x + m - 1) // m) * m


def _tpu_vmem_capacity_bytes():
    """Physical VMEM per TensorCore; falls back to the smallest (v7x) value."""
    try:
        cap = getattr(pltpu.get_tpu_info(), "vmem_capacity_bytes", None)
        if cap:
            return int(cap)
    except Exception:
        pass
    return 64 * 1024 * 1024  # v7x per-core VMEM (the most restrictive case)


def _tile_vmem_budget_bytes():
    # Double-buffered inputs + resident output must fit comfortably: ~1/3 VMEM,
    # capped so v5e/v6e (128 MiB) do not produce absurdly large blocks.
    return min(_tpu_vmem_capacity_bytes() // 3, 40 * 1024 * 1024)


def _vmem_limit_bytes():
    return min((_tpu_vmem_capacity_bytes() * 3) // 4, 96 * 1024 * 1024)


def _pick_tile_rows(total_rows, class_num, x_itemsize):
    """Rows (of 128 samples each) per grid step, sized by VMEM bytes."""
    per_row = (2 * (class_num * _LANES * x_itemsize + _LANES * 4)  # 2x-buffered x + targets
               + 2 * _LANES * 4)                                   # output / accumulator
    rows = max(_SUBLANES, _tile_vmem_budget_bytes() // per_row)
    rows = min(rows, total_rows)
    return max(_SUBLANES, (rows // _SUBLANES) * _SUBLANES)


def _int_pow(d, gamma):
    """d**gamma; integer gamma unrolls to multiplies (VALU), else EUP pow."""
    g = float(gamma)
    if g.is_integer() and 0.0 <= g <= 16.0:
        gi = int(g)
        if gi == 0:
            return jnp.ones_like(d)
        r = d
        for _ in range(gi - 1):
            r = r * d
        return r
    return jnp.power(d, g)


def _tree_fold(op, parts):
    parts = list(parts)
    while len(parts) > 1:
        nxt = [op(parts[k], parts[k + 1]) for k in range(0, len(parts) - 1, 2)]
        if len(parts) % 2:
            nxt.append(parts[-1])
        parts = nxt
    return parts[0]


def _tile_focal_losses(x_ref, t_ref, alpha_ref, gamma):
    """Per-sample focal losses for one block.

    x_ref:     (C, rows, 128) logits (any float dtype; cast to f32 here)
    t_ref:     (rows, 128) int32 target class ids
    alpha_ref: (C, 1, 1) f32 class weights
    returns    (rows, 128) f32; sample index = row * 128 + lane (within block).
    """
    class_num = x_ref.shape[0]
    t = t_ref[...]

    xs = [x_ref[c].astype(jnp.float32) for c in range(class_num)]
    m = _tree_fold(jnp.maximum, xs)  # per-sample max logit (for stable LSE)

    z = None      # softmax denominator  sum_c exp(x_c - m)
    e_t = None    # exp(x_target - m)
    x_t = None    # target logit
    a_t = None    # alpha[target]
    for c in range(class_num):
        e_c = jnp.exp(xs[c] - m)
        sel = (t == c)
        z = e_c if z is None else z + e_c
        se = jnp.where(sel, e_c, 0.0)
        e_t = se if e_t is None else e_t + se
        sx = jnp.where(sel, xs[c], 0.0)
        x_t = sx if x_t is None else x_t + sx
        sa = jnp.where(sel, alpha_ref[c], 0.0)  # (1,1) broadcast
        a_t = sa if a_t is None else a_t + sa

    log_p = (x_t - m) - jnp.log(z)   # log softmax(x)[target]  (LSE, no log(0))
    p_t = e_t / z                    # softmax(x)[target]
    return -a_t * _int_pow(1.0 - p_t, gamma) * log_p


def _focal_reduce_kernel(x_ref, t_ref, alpha_ref, out_ref, *,
                         gamma, n_valid, tile_rows, tiles_per_chunk, num_tiles):
    ci = pl.program_id(0)  # chunk id ("parallel": shards across TensorCores)
    ti = pl.program_id(1)  # tile within chunk ("arbitrary": accumulation)

    @pl.when(ti == 0)
    def _init():
        out_ref[...] = jnp.zeros_like(out_ref)

    loss = _tile_focal_losses(x_ref, t_ref, alpha_ref, gamma)  # (tile_rows, 128)

    # Virtual global tile id (may run past num_tiles when chunks don't divide
    # evenly; the DMA index is clamped in the index_map, the mask handles it).
    gtile = ci * tiles_per_chunk + ti
    interior = gtile < (num_tiles - 1)

    @pl.when(interior)
    def _acc_full():
        out_ref[...] += loss

    @pl.when(jnp.logical_not(interior))
    def _acc_edge():
        # Only edge tiles can contain batch padding / stale edge-block rows.
        row = jax.lax.broadcasted_iota(jnp.int32, loss.shape, 0)
        lane = jax.lax.broadcasted_iota(jnp.int32, loss.shape, 1)
        gidx = (gtile * tile_rows + row) * _LANES + lane
        out_ref[...] += jnp.where(gidx < n_valid, loss, 0.0)


def _focal_per_sample_kernel(x_ref, t_ref, alpha_ref, out_ref, *, gamma):
    out_ref[...] = _tile_focal_losses(x_ref, t_ref, alpha_ref, gamma).astype(out_ref.dtype)


class FocalLoss:
    """JAX/Pallas port of the PyTorch FocalLoss module (softmax branch).

    alpha defaults to ones(class_num, 1), matching the reference __init__.
    Inputs are (N, C) batch-major by default; pass class_major=True with a
    (C, N) array to skip the wrapper-side transpose (zero-copy when N % 1024 == 0).
    """

    def __init__(self, class_num, alpha=None, gamma=2, size_average=True,
                 sigmoid=False, reduce=True):
        if sigmoid:
            # TODO(synk): the sigmoid branch of the reference compares `targets == 0/1`
            # as a Python bool on a whole tensor; semantics are ill-defined, not ported.
            raise NotImplementedError("sigmoid focal-loss branch not implemented")
        if alpha is None:
            alpha = jnp.ones((class_num, 1), dtype=jnp.float32)
        self.alpha = jnp.asarray(alpha, dtype=jnp.float32).reshape(class_num, 1)
        self.gamma = float(gamma)
        self.class_num = int(class_num)
        self.size_average = size_average
        self.reduce = reduce

    def __call__(self, inputs, targets, *, class_major=False, tile_rows=None,
                 num_chunks=2):
        if class_major:
            C, N = inputs.shape
        else:
            N, C = inputs.shape
        assert C == self.class_num

        n_pad = _round_up(max(N, 1), _PAGE)      # <= 1023 samples of padding
        pad = n_pad - N
        R = n_pad // _LANES                      # rows of 128 samples, multiple of 8

        # Class-major (C, R, 128) paged view.  Batch-major callers pay one fused
        # pad+transpose copy; class-major callers reshape for free (dtype kept,
        # so bf16 logits stream as bf16 and halve HBM traffic).
        if class_major:
            x = inputs if pad == 0 else jnp.pad(inputs, ((0, 0), (0, pad)))
            x3 = x.reshape(C, R, _LANES)
        else:
            x = inputs if pad == 0 else jnp.pad(inputs, ((0, pad), (0, 0)))
            x3 = x.T.reshape(C, R, _LANES)

        t2 = jnp.pad(targets.reshape(-1).astype(jnp.int32), (0, pad)).reshape(R, _LANES)
        alpha3 = self.alpha.reshape(C, 1, 1)

        itemsize = jnp.dtype(x3.dtype).itemsize
        if tile_rows is None:
            tile_rows = _pick_tile_rows(R, C, itemsize)
        tile_rows = max(_SUBLANES, (min(int(tile_rows), R) // _SUBLANES) * _SUBLANES)
        num_tiles = pl.cdiv(R, tile_rows)
        vmem_limit = _vmem_limit_bytes()

        x_spec_shape = (C, tile_rows, _LANES)
        t_spec_shape = (tile_rows, _LANES)
        a_spec_shape = (C, 1, 1)

        if self.reduce:
            nc = max(1, min(int(num_chunks), num_tiles))   # >=2 feeds both v7x cores
            tpc = pl.cdiv(num_tiles, nc)
            last = num_tiles - 1

            def x_map(c, i):
                return (0, jnp.minimum(c * tpc + i, last), 0)

            def t_map(c, i):
                return (jnp.minimum(c * tpc + i, last), 0)

            kernel = functools.partial(
                _focal_reduce_kernel, gamma=self.gamma, n_valid=N,
                tile_rows=tile_rows, tiles_per_chunk=tpc, num_tiles=num_tiles)

            partials = pl.pallas_call(
                kernel,
                out_shape=jax.ShapeDtypeStruct((nc * tile_rows, _LANES), jnp.float32),
                grid=(nc, tpc),
                in_specs=[
                    pl.BlockSpec(x_spec_shape, x_map),
                    pl.BlockSpec(t_spec_shape, t_map),
                    pl.BlockSpec(a_spec_shape, lambda c, i: (0, 0, 0)),
                ],
                out_specs=pl.BlockSpec(t_spec_shape, lambda c, i: (c, 0)),
                compiler_params=pltpu.CompilerParams(
                    dimension_semantics=("parallel", "arbitrary"),
                    vmem_limit_bytes=vmem_limit),
            )(x3, t2, alpha3)

            total = jnp.sum(partials)
            return total / N if self.size_average else total

        kernel = functools.partial(_focal_per_sample_kernel, gamma=self.gamma)
        out = pl.pallas_call(
            kernel,
            out_shape=jax.ShapeDtypeStruct((R, _LANES), jnp.float32),  # lane-dense slab
            grid=(num_tiles,),
            in_specs=[
                pl.BlockSpec(x_spec_shape, lambda i: (0, i, 0)),
                pl.BlockSpec(t_spec_shape, lambda i: (i, 0)),
                pl.BlockSpec(a_spec_shape, lambda i: (0, 0, 0)),
            ],
            out_specs=pl.BlockSpec(t_spec_shape, lambda i: (i, 0)),
            compiler_params=pltpu.CompilerParams(
                dimension_semantics=("parallel",),
                vmem_limit_bytes=vmem_limit),
        )(x3, t2, alpha3)
        return out.reshape(-1)[:N].reshape(N, 1)


def _reference_focal_loss(inputs, targets, alpha, gamma, size_average=True, reduce=True):
    """Pure-JAX reference mirroring the PyTorch forward (softmax branch)."""
    N, C = inputs.shape
    p = jax.nn.softmax(inputs, axis=1)
    mask = jax.nn.one_hot(targets, C, dtype=inputs.dtype)
    probs = jnp.sum(p * mask, axis=1, keepdims=True)
    alpha_t = alpha.reshape(-1)[targets].reshape(-1, 1)
    batch_loss = -alpha_t * jnp.power(1.0 - probs, gamma) * jnp.log(probs)
    if not reduce:
        return batch_loss
    return jnp.mean(batch_loss) if size_average else jnp.sum(batch_loss)


if __name__ == "__main__":
    key = jax.random.PRNGKey(0)
    k1, k2, k3, k4, k5, k6 = jax.random.split(key, 6)

    # Small shapes consistent with the module: N observations x class_num logits.
    N, C = 8, 4
    inputs = jax.random.normal(k1, (N, C), dtype=jnp.float32)
    targets = jax.random.randint(k2, (N,), 0, C, dtype=jnp.int32)
    alpha = (jnp.arange(1, C + 1, dtype=jnp.float32) / C).reshape(C, 1)

    # mean reduction
    fl_mean = FocalLoss(class_num=C, alpha=alpha, gamma=2, size_average=True, reduce=True)
    loss_mean = jax.block_until_ready(fl_mean(inputs, targets))
    ref_mean = _reference_focal_loss(inputs, targets, alpha, 2.0, size_average=True)
    assert jnp.allclose(loss_mean, ref_mean, rtol=1e-5, atol=1e-6), (loss_mean, ref_mean)

    # per-sample (no reduce)
    fl_none = FocalLoss(class_num=C, alpha=alpha, gamma=2, reduce=False)
    per = jax.block_until_ready(fl_none(inputs, targets))
    ref_per = _reference_focal_loss(inputs, targets, alpha, 2.0, reduce=False)
    assert per.shape == (N, 1)
    assert jnp.allclose(per, ref_per, rtol=1e-5, atol=1e-6)

    # Multi-tile / multi-chunk sum reduction: exercises chunked grid, clamped
    # index maps, edge masking and the wide partial-sum accumulator.
    N2, C2 = 3000, 16
    inputs2 = jax.random.normal(k3, (N2, C2), dtype=jnp.float32)
    targets2 = jax.random.randint(k4, (N2,), 0, C2, dtype=jnp.int32)
    fl_sum = FocalLoss(class_num=C2, alpha=None, gamma=2, size_average=False, reduce=True)
    loss_sum = jax.block_until_ready(fl_sum(inputs2, targets2, tile_rows=8, num_chunks=2))
    ref_sum = _reference_focal_loss(inputs2, targets2, jnp.ones((C2, 1), jnp.float32),
                                    2.0, size_average=False)
    assert jnp.allclose(loss_sum, ref_sum, rtol=1e-4, atol=1e-2), (loss_sum, ref_sum)

    # bf16 logits + class-major input (skips the wrapper transpose), per-sample.
    N3, C3 = 2500, 4
    x3 = jax.random.normal(k5, (N3, C3), dtype=jnp.float32).astype(jnp.bfloat16)
    t3 = jax.random.randint(k6, (N3,), 0, C3, dtype=jnp.int32)
    fl3 = FocalLoss(class_num=C3, alpha=None, gamma=2, reduce=False)
    per3 = jax.block_until_ready(fl3(x3.T, t3, class_major=True, tile_rows=8))
    ref3 = _reference_focal_loss(x3.astype(jnp.float32), t3,
                                 jnp.ones((C3, 1), jnp.float32), 2.0, reduce=False)
    assert per3.shape == (N3, 1)
    assert jnp.allclose(per3, ref3, rtol=1e-4, atol=1e-4)

    print("KERNEL_OK")
</pallas_src>

<mosaic_0001>
module attributes {stable_mosaic.version = 11 : i64} {
  func.func @_focal_reduce_kernel(%arg0: i32, %arg1: i32, %arg2: memref<4x8x128xf32, #tpu.memory_space<vmem>>, %arg3: memref<8x128xi32, #tpu.memory_space<vmem>>, %arg4: memref<4x1x1xf32, #tpu.memory_space<vmem>>, %arg5: memref<8x128xf32, #tpu.memory_space<vmem>>) attributes {dimension_semantics = [#tpu.dimension_semantics<parallel>, #tpu.dimension_semantics<arbitrary>], iteration_bounds = array<i64: 1, 1>, scalar_prefetch = 0 : i64, scratch_operands = 0 : i64, tpu.core_type = #tpu.core_type<tc>, window_params = [{transform_indices = @transform_0, window_bounds = array<i64: 4, 8, 128>}, {transform_indices = @transform_1, window_bounds = array<i64: 8, 128>}, {pipeline_mode = #tpu.pipeline_mode<synchronous>, transform_indices = @transform_2, window_bounds = array<i64: 4, 1, 1>}, {transform_indices = @transform_3, window_bounds = array<i64: 8, 128>}]} {
    %c0_i32 = arith.constant 0 : i32
    %0 = arith.cmpi eq, %arg1, %c0_i32 : i32
    %1 = arith.extui %0 : i1 to i32
    %c0_i32_0 = arith.constant 0 : i32
    %2 = arith.cmpi ne, %1, %c0_i32_0 : i32
    scf.if %2 {
      %cst_41 = arith.constant 0.000000e+00 : f32
      %102 = vector.broadcast %cst_41 : f32 to vector<8x128xf32>
      %c0_42 = arith.constant 0 : index
      %c0_43 = arith.constant 0 : index
      %103 = vector.load %arg5[%c0_42, %c0_43] : memref<8x128xf32, #tpu.memory_space<vmem>>, vector<8x128xf32>
      tpu.vector_store %arg5[%c0_42, %c0_43], %102 {strides = array<i32>} : memref<8x128xf32, #tpu.memory_space<vmem>>, vector<8x128xf32>,
    } else {
    }
    %c0 = arith.constant 0 : index
    %c0_1 = arith.constant 0 : index
    %3 = vector.load %arg3[%c0, %c0_1] : memref<8x128xi32, #tpu.memory_space<vmem>>, vector<8x128xi32>
    %c0_2 = arith.constant 0 : index
    %c0_3 = arith.constant 0 : index
    %c0_4 = arith.constant 0 : index
    %4 = vector.load %arg2[%c0_2, %c0_3, %c0_4] : memref<4x8x128xf32, #tpu.memory_space<vmem>>, vector<1x8x128xf32>
    %5 = vector.shape_cast %4 : vector<1x8x128xf32> to vector<8x128xf32>
    %c1 = arith.constant 1 : index
    %c0_5 = arith.constant 0 : index
    %c0_6 = arith.constant 0 : index
    %6 = vector.load %arg2[%c1, %c0_5, %c0_6] : memref<4x8x128xf32, #tpu.memory_space<vmem>>, vector<1x8x128xf32>
    %7 = vector.shape_cast %6 : vector<1x8x128xf32> to vector<8x128xf32>
    %c2 = arith.constant 2 : index
    %c0_7 = arith.constant 0 : index
    %c0_8 = arith.constant 0 : index
    %8 = vector.load %arg2[%c2, %c0_7, %c0_8] : memref<4x8x128xf32, #tpu.memory_space<vmem>>, vector<1x8x128xf32>
    %9 = vector.shape_cast %8 : vector<1x8x128xf32> to vector<8x128xf32>
    %c3 = arith.constant 3 : index
    %c0_9 = arith.constant 0 : index
    %c0_10 = arith.constant 0 : index
    %10 = vector.load %arg2[%c3, %c0_9, %c0_10] : memref<4x8x128xf32, #tpu.memory_space<vmem>>, vector<1x8x128xf32>
    %11 = vector.shape_cast %10 : vector<1x8x128xf32> to vector<8x128xf32>
    %12 = arith.maximumf %5, %7 : vector<8x128xf32>
    %13 = arith.maximumf %9, %11 : vector<8x128xf32>
    %14 = arith.maximumf %12, %13 : vector<8x128xf32>
    %15 = arith.subf %5, %14 : vector<8x128xf32>
    %16 = math.exp %15 : vector<8x128xf32>
    %c0_i32_11 = arith.constant 0 : i32
    %17 = vector.broadcast %c0_i32_11 : i32 to vector<8x128xi32>
    %18 = arith.cmpi eq, %3, %17 : vector<8x128xi32>
    %cst = arith.constant 0.000000e+00 : f32
    %19 = vector.broadcast %cst : f32 to vector<8x128xf32>
    %20 = arith.select %18, %16, %19 : vector<8x128xi1>, vector<8x128xf32>
    %cst_12 = arith.constant 0.000000e+00 : f32
    %21 = vector.broadcast %cst_12 : f32 to vector<8x128xf32>
    %22 = arith.select %18, %5, %21 : vector<8x128xi1>, vector<8x128xf32>
    %c0_13 = arith.constant 0 : index
    %c0_14 = arith.constant 0 : index
    %c0_15 = arith.constant 0 : index
    %23 = vector.load %arg4[%c0_13, %c0_14, %c0_15] : memref<4x1x1xf32, #tpu.memory_space<vmem>>, vector<1x1x1xf32>
    %24 = vector.shape_cast %23 : vector<1x1x1xf32> to vector<1x1xf32>
    %cst_16 = arith.constant 0.000000e+00 : f32
    %25 = vector.shape_cast %24 : vector<1x1xf32> to vector<1x1xf32>
    %26 = vector.broadcast %25 : vector<1x1xf32> to vector<8x128xf32>
    %27 = vector.broadcast %cst_16 : f32 to vector<8x128xf32>
    %28 = arith.select %18, %26, %27 : vector<8x128xi1>, vector<8x128xf32>
    %29 = arith.subf %7, %14 : vector<8x128xf32>
    %30 = math.exp %29 : vector<8x128xf32>
    %c1_i32 = arith.constant 1 : i32
    %31 = vector.broadcast %c1_i32 : i32 to vector<8x128xi32>
    %32 = arith.cmpi eq, %3, %31 : vector<8x128xi32>
    %33 = arith.addf %16, %30 : vector<8x128xf32>
    %cst_17 = arith.constant 0.000000e+00 : f32
    %34 = vector.broadcast %cst_17 : f32 to vector<8x128xf32>
    %35 = arith.select %32, %30, %34 : vector<8x128xi1>, vector<8x128xf32>
    %36 = arith.addf %20, %35 : vector<8x128xf32>
    %cst_18 = arith.constant 0.000000e+00 : f32
    %37 = vector.broadcast %cst_18 : f32 to vector<8x128xf32>
    %38 = arith.select %32, %7, %37 : vector<8x128xi1>, vector<8x128xf32>
    %39 = arith.addf %22, %38 : vector<8x128xf32>
    %c1_19 = arith.constant 1 : index
    %c0_20 = arith.constant 0 : index
    %c0_21 = arith.constant 0 : index
    %40 = vector.load %arg4[%c1_19, %c0_20, %c0_21] : memref<4x1x1xf32, #tpu.memory_space<vmem>>, vector<1x1x1xf32>
    %41 = vector.shape_cast %40 : vector<1x1x1xf32> to vector<1x1xf32>
    %cst_22 = arith.constant 0.000000e+00 : f32
    %42 = vector.shape_cast %41 : vector<1x1xf32> to vector<1x1xf32>
    %43 = vector.broadcast %42 : vector<1x1xf32> to vector<8x128xf32>
    %44 = vector.broadcast %cst_22 : f32 to vector<8x128xf32>
    %45 = arith.select %32, %43, %44 : vector<8x128xi1>, vector<8x128xf32>
    %46 = arith.addf %28, %45 : vector<8x128xf32>
    %47 = arith.subf %9, %14 : vector<8x128xf32>
    %48 = math.exp %47 : vector<8x128xf32>
    %c2_i32 = arith.constant 2 : i32
    %49 = vector.broadcast %c2_i32 : i32 to vector<8x128xi32>
    %50 = arith.cmpi eq, %3, %49 : vector<8x128xi32>
    %51 = arith.addf %33, %48 : vector<8x128xf32>
    %cst_23 = arith.constant 0.000000e+00 : f32
    %52 = vector.broadcast %cst_23 : f32 to vector<8x128xf32>
    %53 = arith.select %50, %48, %52 : vector<8x128xi1>, vector<8x128xf32>
    %54 = arith.addf %36, %53 : vector<8x128xf32>
    %cst_24 = arith.constant 0.000000e+00 : f32
    %55 = vector.broadcast %cst_24 : f32 to vector<8x128xf32>
    %56 = arith.select %50, %9, %55 : vector<8x128xi1>, vector<8x128xf32>
    %57 = arith.addf %39, %56 : vector<8x128xf32>
    %c2_25 = arith.constant 2 : index
    %c0_26 = arith.constant 0 : index
    %c0_27 = arith.constant 0 : index
    %58 = vector.load %arg4[%c2_25, %c0_26, %c0_27] : memref<4x1x1xf32, #tpu.memory_space<vmem>>, vector<1x1x1xf32>
    %59 = vector.shape_cast %58 : vector<1x1x1xf32> to vector<1x1xf32>
    %cst_28 = arith.constant 0.000000e+00 : f32
    %60 = vector.shape_cast %59 : vector<1x1xf32> to vector<1x1xf32>
    %61 = vector.broadcast %60 : vector<1x1xf32> to vector<8x128xf32>
    %62 = vector.broadcast %cst_28 : f32 to vector<8x128xf32>
    %63 = arith.select %50, %61, %62 : vector<8x128xi1>, vector<8x128xf32>
    %64 = arith.addf %46, %63 : vector<8x128xf32>
    %65 = arith.subf %11, %14 : vector<8x128xf32>
    %66 = math.exp %65 : vector<8x128xf32>
    %c3_i32 = arith.constant 3 : i32
    %67 = vector.broadcast %c3_i32 : i32 to vector<8x128xi32>
    %68 = arith.cmpi eq, %3, %67 : vector<8x128xi32>
    %69 = arith.addf %51, %66 : vector<8x128xf32>
    %cst_29 = arith.constant 0.000000e+00 : f32
    %70 = vector.broadcast %cst_29 : f32 to vector<8x128xf32>
    %71 = arith.select %68, %66, %70 : vector<8x128xi1>, vector<8x128xf32>
    %72 = arith.addf %54, %71 : vector<8x128xf32>
    %cst_30 = arith.constant 0.000000e+00 : f32
    %73 = vector.broadcast %cst_30 : f32 to vector<8x128xf32>
    %74 = arith.select %68, %11, %73 : vector<8x128xi1>, vector<8x128xf32>
    %75 = arith.addf %57, %74 : vector<8x128xf32>
    %c3_31 = arith.constant 3 : index
    %c0_32 = arith.constant 0 : index
    %c0_33 = arith.constant 0 : index
    %76 = vector.load %arg4[%c3_31, %c0_32, %c0_33] : memref<4x1x1xf32, #tpu.memory_space<vmem>>, vector<1x1x1xf32>
    %77 = vector.shape_cast %76 : vector<1x1x1xf32> to vector<1x1xf32>
    %cst_34 = arith.constant 0.000000e+00 : f32
    %78 = vector.shape_cast %77 : vector<1x1xf32> to vector<1x1xf32>
    %79 = vector.broadcast %78 : vector<1x1xf32> to vector<8x128xf32>
    %80 = vector.broadcast %cst_34 : f32 to vector<8x128xf32>
    %81 = arith.select %68, %79, %80 : vector<8x128xi1>, vector<8x128xf32>
    %82 = arith.addf %64, %81 : vector<8x128xf32>
    %83 = arith.subf %75, %14 : vector<8x128xf32>
    %84 = math.log %69 : vector<8x128xf32>
    %85 = arith.subf %83, %84 : vector<8x128xf32>
    %86 = arith.divf %72, %69 : vector<8x128xf32>
    %cst_35 = arith.constant 0.000000e+00 : f32
    %87 = vector.broadcast %cst_35 : f32 to vector<8x128xf32>
    %88 = arith.subf %87, %82 : vector<8x128xf32>
    %cst_36 = arith.constant 1.000000e+00 : f32
    %89 = vector.broadcast %cst_36 : f32 to vector<8x128xf32>
    %90 = arith.subf %89, %86 : vector<8x128xf32>
    %91 = arith.mulf %90, %90 : vector<8x128xf32>
    %92 = arith.mulf %88, %91 : vector<8x128xf32>
    %93 = arith.mulf %92, %85 : vector<8x128xf32>
    %c1_i32_37 = arith.constant 1 : i32
    %94 = arith.muli %arg0, %c1_i32_37 : i32
    %95 = arith.addi %94, %arg1 : i32
    %c0_i32_38 = arith.constant 0 : i32
    %96 = arith.cmpi slt, %95, %c0_i32_38 : i32
    %97 = arith.extui %96 : i1 to i32
    %c0_i32_39 = arith.constant 0 : i32
    %98 = arith.cmpi ne, %97, %c0_i32_39 : i32
    scf.if %98 {
      %c0_41 = arith.constant 0 : index
      %c0_42 = arith.constant 0 : index
      %102 = vector.load %arg5[%c0_41, %c0_42] : memref<8x128xf32, #tpu.memory_space<vmem>>, vector<8x128xf32>
      %103 = arith.addf %102, %93 : vector<8x128xf32>
      %c0_43 = arith.constant 0 : index
      %c0_44 = arith.constant 0 : index
      %104 = vector.load %arg5[%c0_43, %c0_44] : memref<8x128xf32, #tpu.memory_space<vmem>>, vector<8x128xf32>
      tpu.vector_store %arg5[%c0_43, %c0_44], %103 {strides = array<i32>} : memref<8x128xf32, #tpu.memory_space<vmem>>, vector<8x128xf32>,
    } else {
    }
    %true = arith.constant true
    %99 = arith.xori %96, %true : i1
    %100 = arith.extui %99 : i1 to i32
    %c0_i32_40 = arith.constant 0 : i32
    %101 = arith.cmpi ne, %100, %c0_i32_40 : i32
    scf.if %101 {
      %102 = tpu.iota {dimensions = array<i32: 0>} : vector<8x128xi32>
      %103 = tpu.iota {dimensions = array<i32: 1>} : vector<8x128xi32>
      %c8_i32 = arith.constant 8 : i32
      %104 = arith.muli %95, %c8_i32 : i32
      %105 = vector.broadcast %104 : i32 to vector<8x128xi32>
      %106 = arith.addi %105, %102 : vector<8x128xi32>
      %c128_i32 = arith.constant 128 : i32
      %107 = vector.broadcast %c128_i32 : i32 to vector<8x128xi32>
      %108 = arith.muli %106, %107 : vector<8x128xi32>
      %109 = arith.addi %108, %103 : vector<8x128xi32>
      %c0_41 = arith.constant 0 : index
      %c0_42 = arith.constant 0 : index
      %110 = vector.load %arg5[%c0_41, %c0_42] : memref<8x128xf32, #tpu.memory_space<vmem>>, vector<8x128xf32>
      %c8_i32_43 = arith.constant 8 : i32
      %111 = vector.broadcast %c8_i32_43 : i32 to vector<8x128xi32>
      %112 = arith.cmpi slt, %109, %111 : vector<8x128xi32>
      %cst_44 = arith.constant 0.000000e+00 : f32
      %113 = vector.broadcast %cst_44 : f32 to vector<8x128xf32>
      %114 = arith.select %112, %93, %113 : vector<8x128xi1>, vector<8x128xf32>
      %115 = arith.addf %110, %114 : vector<8x128xf32>
      %c0_45 = arith.constant 0 : index
      %c0_46 = arith.constant 0 : index
      %116 = vector.load %arg5[%c0_45, %c0_46] : memref<8x128xf32, #tpu.memory_space<vmem>>, vector<8x128xf32>
      tpu.vector_store %arg5[%c0_45, %c0_46], %115 {strides = array<i32>} : memref<8x128xf32, #tpu.memory_space<vmem>>, vector<8x128xf32>,
    } else {
    }
    return
  }
  func.func @transform_0(%arg0: i32, %arg1: i32) -> (i32, i32, i32) {
    %c1_i32 = arith.constant 1 : i32
    %0 = arith.muli %arg0, %c1_i32 : i32
    %1 = arith.addi %0, %arg1 : i32
    %c0_i32 = arith.constant 0 : i32
    %2 = arith.minsi %1, %c0_i32 : i32
    %c0_i32_0 = arith.constant 0 : i32
    %c0_i32_1 = arith.constant 0 : i32
    %c0_i32_2 = arith.constant 0 : i32
    return %c0_i32_0, %2, %c0_i32_1 : i32, i32, i32
  }
  func.func @transform_1(%arg0: i32, %arg1: i32) -> (i32, i32) {
    %c1_i32 = arith.constant 1 : i32
    %0 = arith.muli %arg0, %c1_i32 : i32
    %1 = arith.addi %0, %arg1 : i32
    %c0_i32 = arith.constant 0 : i32
    %2 = arith.minsi %1, %c0_i32 : i32
    %c0_i32_0 = arith.constant 0 : i32
    %c0_i32_1 = arith.constant 0 : i32
    return %2, %c0_i32_0 : i32, i32
  }
  func.func @transform_2(%arg0: i32, %arg1: i32) -> (i32, i32, i32) {
    %c0_i32 = arith.constant 0 : i32
    %c0_i32_0 = arith.constant 0 : i32
    %c0_i32_1 = arith.constant 0 : i32
    %c0_i32_2 = arith.constant 0 : i32
    return %c0_i32, %c0_i32_0, %c0_i32_1 : i32, i32, i32
  }
  func.func @transform_3(%arg0: i32, %arg1: i32) -> (i32, i32) {
    %c0_i32 = arith.constant 0 : i32
    %c0_i32_0 = arith.constant 0 : i32
    return %arg0, %c0_i32 : i32, i32
  }
}

</mosaic_0001>

<llo_original>
// kernel: tpu_custom_call.1
$region0: #{tpu_custom_call.1}
  #allocation0 [shape = 'u32[]', space=smem, size = 0x4, offset = 0x4, fixed_abs, tag = 'smem constant byte address 0x4 - core index']
  #allocation1 [shape = 'u32[144,128]{1,0:T(1,128)}', space=vmem, size = 0x12000, scoped, tag = 'internal scratch']
  %s0 = inlined_call_operand.hbm [shape: f32[4,8,128], index: 0, kind: input, shape index: {}]
  %s1 = inlined_call_operand.vmem [shape: s32[8,128], index: 1, kind: input, shape index: {}]
  %s2 = inlined_call_operand.vmem [shape: f32[4,1,1], index: 2, kind: input, shape index: {}]
  %s3 = inlined_call_operand.hbm [shape: f32[8,128], index: 3, kind: output, shape index: {}]
  %s4 = sld [smem:[#allocation0]]
  $region38: #{tpu_custom_call.1} parent=0
    _
  %s6 = ssub.s32 1, %s4
  %s7 = scalar_select 0, %s6, %s4
  $region1: #{tpu_custom_call.1} parent=0
    #allocation2 [shape = 'u8[16384]{0}', space=vmem, size = 0x4000, scoped, tag = 'input window, operand 0, single buffered']
    #allocation3 [shape = 's32[1]{0}', space=sflag, size = 0x4, scoped, tag = 'scoped memory for tpu_custom_call.1']
    #allocation4 [shape = 's32[1]{0}', space=sflag, size = 0x4, scoped, tag = 'scoped memory for tpu_custom_call.1']
    #allocation5 [shape = 'u8[4096]{0}', space=vmem, size = 0x1000, scoped, tag = 'output window, operand 0, single buffered']
    %8 = vsyncpa [#allocation3], 0
    %9 = vsyncpa [#allocation4], 0
    // Predicated region
    $region2: #{tpu_custom_call.1} parent=1 // pred_check
      _
    $region3: #{tpu_custom_call.1} parent=1 // pred_check_branch
      %11 = sbr.rel (0) target = $region5
    $region4: #{tpu_custom_call.1} parent=1 // pred_region
      %s12 = sadd.s32 0, 0
      %p13 = scmp.lt.s32.totalorder %s12, 0
      %s14 = scalar_select %p13, %s12, 0
      %s16 = ssub.s32 512, 512
      %17 = vsyncadd [#allocation3], %s16
      %s18 = smul.addr %s14, 128
      %s19 = scalar_lea.hbm %s0, %s18
      %s20 = sshll.u32 [#allocation2], 4
      %s21 = int_to_ptr.vmem [resolvable:$true] %s20
      %26 = dma.hbm_to_vmem [thread:$0]  %s19, 512, %s21, [#allocation3], 128, 128, 8
    $region5: #{tpu_custom_call.1} parent=1 // pred_fallthru
      _
    // Predicated region
    $region6: #{tpu_custom_call.1} parent=1 // pred_check
      _
    $region7: #{tpu_custom_call.1} parent=1 // pred_check_branch
      %28 = sbr.rel (0) target = $region9
    $region8: #{tpu_custom_call.1} parent=1 // pred_region
      %s29 = sadd.s32 0, 0
      %p30 = scmp.lt.s32.totalorder %s29, 0
      %s31 = scalar_select %p30, %s29, 0
      %p32 = scmp.lt.s32.totalorder %s31, 0
      %s33 = scalar_select %p32, %s31, 0
      %s34 = smul.addr %s33, 8
      %s35 = scalar_lea.vmem %s1, %s34
      %s36 = sadd.s32 0, 0
      %p37 = scmp.lt.s32.totalorder %s36, 0
      %s38 = scalar_select %p37, %s36, 0
    $region9: #{tpu_custom_call.1} parent=1 // pred_fallthru
      _
    // Predicated region
    $region10: #{tpu_custom_call.1} parent=1 // pred_check
      _
    $region11: #{tpu_custom_call.1} parent=1 // pred_check_branch
      %40 = sbr.rel (0) target = $region13
    $region12: #{tpu_custom_call.1} parent=1 // pred_region
      _
    $region13: #{tpu_custom_call.1} parent=1 // pred_fallthru
      _
    // Predicated region
    $region14: #{tpu_custom_call.1} parent=1 // pred_check
      _
    $region15: #{tpu_custom_call.1} parent=1 // pred_check_branch
      %42 = sbr.rel (0) target = $region17
    $region16: #{tpu_custom_call.1} parent=1 // pred_region
      %43 = dma.done [#allocation3], 512
    $region17: #{tpu_custom_call.1} parent=1 // pred_fallthru
      _
    %s44 = sadd.s32 0, 0
    %p45 = scmp.lt.s32.totalorder %s44, 0
    %s46 = scalar_select %p45, %s44, 0
    %p47 = scmp.lt.s32.totalorder %s46, 0
    %s48 = scalar_select %p47, %s46, 0
    %s49 = smul.addr %s48, 8
    %s50 = scalar_lea.vmem %s1, %s49
    %s51 = sadd.s32 0, 0
    %p52 = scmp.lt.s32.totalorder %s51, 0
    %s53 = scalar_select %p52, %s51, 0
    %s54 = sadd.s32 0, 0
    %p55 = scmp.lt.s32.totalorder %s54, 0
    %s56 = scalar_select %p55, %s54, 0
    %p57 = scmp.lt.s32.totalorder %s56, 0
    %s58 = scalar_select %p57, %s56, 0
    %s59 = smul.addr %s58, 8
    %s60 = scalar_lea.vmem %s1, %s59
    %s61 = sadd.s32 0, 0
    %p62 = scmp.lt.s32.totalorder %s61, 0
    %s63 = scalar_select %p62, %s61, 0
    %p64 = scmp.eq.s32.totalorder 0, 0
    // Predicated region
    $region18: #{tpu_custom_call.1} parent=1 // pred_check
      %p65 = pneg %p64
    $region19: #{tpu_custom_call.1} parent=1 // pred_check_branch
      %67 = sbr.rel (%p65) target = $region21
    $region20: #{tpu_custom_call.1} parent=1 // pred_region
      %68 = vst [vmem:[#allocation5] sm:$0xff] 0.0
    $region21: #{tpu_custom_call.1} parent=1 // pred_fallthru
      _
    %v69 = vld [vmem:[%s60] sm:$0xff]
    %v70 = vld [vmem:[#allocation2] sm:$0xff]
    %s71 = scalar_lea.vmem [#allocation2], 8
    %v72 = vld [vmem:[%s71] sm:$0xff]
    %s73 = scalar_lea.vmem [#allocation2], 16
    %v74 = vld [vmem:[%s73] sm:$0xff]
    %s75 = scalar_lea.vmem [#allocation2], 24
    %v76 = vld [vmem:[%s75] sm:$0xff]
    %v77 = vmax.f32 %v70, %v72
    %v78 = vmax.f32 %v74, %v76
    %v79 = vmax.f32 %v77, %v78
    %v80 = vsub.f32 %v70, %v79
    %v81 = vmul.f32 %v80, 1.442695
    %v82 = vpow.pop %v81
    %vm83 = vcmp.eq.s32.totalorder %v69, 0
    %v84 = vsel %vm83, %v82, 0.0
    %v85 = vsel %vm83, %v70, 0.0
    %v86 = vld [vmem:[%s2] sm:$0x1]
    %v88 = vlaneseq
    %v89 = vshrl.u32 %v88, 7
    %v90 = vsub.s32 0, %v89
    %v91 = vrot.slane %v86, %v90
    %92 = vset.pattern.permute.xlu0 0
    %93 = vperm.xlu0 %92, %v91
    %v94 = vpop.permute.xlu0 %93
    %v96 = vsel %vm83, %v94, 0.0
    %v97 = vsub.f32 %v72, %v79
    %v98 = vmul.f32 %v97, 1.442695
    %v99 = vpow.pop %v98
    %vm100 = vcmp.eq.s32.totalorder %v69, 1
    %v101 = vadd.f32 %v82, %v99
    %v102 = vsel %vm100, %v99, 0.0
    %v103 = vadd.f32 %v84, %v102
    %v104 = vsel %vm100, %v72, 0.0
    %v105 = vadd.f32 %v85, %v104
    %s106 = scalar_lea.vmem %s2, 1
    %v107 = vld [vmem:[%s106] sm:$0x1]
    %v109 = vlaneseq
    %v110 = vshrl.u32 %v109, 7
    %v111 = vsub.s32 0, %v110
    %v112 = vrot.slane %v107, %v111
    %113 = vset.pattern.permute.xlu0 0
    %114 = vperm.xlu0 %113, %v112
    %v115 = vpop.permute.xlu0 %114
    %v117 = vsel %vm100, %v115, 0.0
    %v118 = vadd.f32 %v96, %v117
    %v119 = vsub.f32 %v74, %v79
    %v120 = vmul.f32 %v119, 1.442695
    %v121 = vpow.pop %v120
    %vm122 = vcmp.eq.s32.totalorder %v69, 2
    %v123 = vadd.f32 %v101, %v121
    %v124 = vsel %vm122, %v121, 0.0
    %v125 = vadd.f32 %v103, %v124
    %v126 = vsel %vm122, %v74, 0.0
    %v127 = vadd.f32 %v105, %v126
    %s128 = scalar_lea.vmem %s2, 2
    %v129 = vld [vmem:[%s128] sm:$0x1]
    %v131 = vlaneseq
    %v132 = vshrl.u32 %v131, 7
    %v133 = vsub.s32 0, %v132
    %v134 = vrot.slane %v129, %v133
    %135 = vset.pattern.permute.xlu0 0
    %136 = vperm.xlu0 %135, %v134
    %v137 = vpop.permute.xlu0 %136
    %v139 = vsel %vm122, %v137, 0.0
    %v140 = vadd.f32 %v118, %v139
    %v141 = vsub.f32 %v76, %v79
    %v142 = vmul.f32 %v141, 1.442695
    %v143 = vpow.pop %v142
    %vm144 = vcmp.eq.s32.totalorder %v69, 3
    %v145 = vadd.f32 %v123, %v143
    %v146 = vsel %vm144, %v143, 0.0
    %v147 = vadd.f32 %v125, %v146
    %v148 = vsel %vm144, %v76, 0.0
    %v149 = vadd.f32 %v127, %v148
    %s150 = scalar_lea.vmem %s2, 3
    %v151 = vld [vmem:[%s150] sm:$0x1]
    %v153 = vlaneseq
    %v154 = vshrl.u32 %v153, 7
    %v155 = vsub.s32 0, %v154
    %v156 = vrot.slane %v151, %v155
    %157 = vset.pattern.permute.xlu0 0
    %158 = vperm.xlu0 %157, %v156
    %v159 = vpop.permute.xlu0 %158
    %v161 = vsel %vm144, %v159, 0.0
    %v162 = vadd.f32 %v140, %v161
    %v163 = vsub.f32 %v149, %v79
    %v164 = vlog2.pop %v145
    %v165 = vmul.f32 %v164, 0.6931472
    %v166 = vsub.f32 %v163, %v165
    %v167 = vrcp.pop %v145
    %v168 = vmul.f32 %v147, %v167
    %v169 = vsub.f32 0.0, %v162
    %v170 = vsub.f32 1.0, %v168
    %v171 = vmul.f32 %v170, %v170
    %v172 = vmul.f32 %v169, %v171
    %v173 = vmul.f32 %v172, %v166
    %s174 = sadd.s32 0, 0
    %p175 = scmp.lt.s32.totalorder %s174, 0
    // Predicated region
    $region22: #{tpu_custom_call.1} parent=1 // pred_check
      %p176 = pneg %p175
    $region23: #{tpu_custom_call.1} parent=1 // pred_check_branch
      %178 = sbr.rel (%p176) target = $region25
    $region24: #{tpu_custom_call.1} parent=1 // pred_region
      %v179 = vld [vmem:[#allocation5] sm:$0xff]
      %v180 = vadd.f32 %v179, %v173
      %181 = vst [vmem:[#allocation5] sm:$0xff] %v180
    $region25: #{tpu_custom_call.1} parent=1 // pred_fallthru
      _
    %p182 = scmp.ge.s32.totalorder %s174, 0
    // Predicated region
    $region26: #{tpu_custom_call.1} parent=1 // pred_check
      %p183 = pneg %p182
    $region27: #{tpu_custom_call.1} parent=1 // pred_check_branch
      %185 = sbr.rel (%p183) target = $region29
    $region28: #{tpu_custom_call.1} parent=1 // pred_region
      %v186 = vlaneseq
      %v187 = vshrl.u32 %v186, 7
      %v188 = vlaneseq
      %v189 = vand.u32 %v188, 127
      %s190 = smul.u32 %s174, 8
      %v191 = vstv %s190
      %v192 = vadd.s32 %v191, %v187
      %v193 = vmul.u32 %v192, 128
      %v194 = vadd.s32 %v193, %v189
      %v195 = vld [vmem:[#allocation5] sm:$0xff]
      %vm196 = vcmp.lt.s32.totalorder %v194, 8
      %v197 = vsel %vm196, %v173, 0.0
      %v198 = vadd.f32 %v195, %v197
      %199 = vst [vmem:[#allocation5] sm:$0xff] %v198
    $region29: #{tpu_custom_call.1} parent=1 // pred_fallthru
      _
    // Predicated region
    $region30: #{tpu_custom_call.1} parent=1 // pred_check
      _
    $region31: #{tpu_custom_call.1} parent=1 // pred_check_branch
      %201 = sbr.rel (0) target = $region33
    $region32: #{tpu_custom_call.1} parent=1 // pred_region
      %s203 = ssub.s32 128, 128
      %204 = vsyncadd [#allocation4], %s203
      %s206 = sshll.u32 [#allocation5], 4
      %s207 = int_to_ptr.vmem [resolvable:$true] %s206
      %209 = dma.vmem_to_hbm [thread:$0]  %s207, 128, %s3, [#allocation4]
    $region33: #{tpu_custom_call.1} parent=1 // pred_fallthru
      _
    // Predicated region
    $region34: #{tpu_custom_call.1} parent=1 // pred_check
      _
    $region35: #{tpu_custom_call.1} parent=1 // pred_check_branch
      %211 = sbr.rel (0) target = $region37
    $region36: #{tpu_custom_call.1} parent=1 // pred_region
      %212 = dma.done [#allocation4], 128
    $region37: #{tpu_custom_call.1} parent=1 // pred_fallthru
      _
    %213 = vsyncpa [#allocation3], 1
    %214 = vsyncpa [#allocation4], 1

</llo_original>
